<compile_context>
chip_gen: v7x
topology: tpu7x:2x2x1
jax: 0.10.0
libtpu: 0.0.40
codegen_flags: <defaults>
</compile_context>

<pallas_src>
import jax
import jax.numpy as jnp
from jax.experimental import pallas as pl
from jax.experimental.pallas import tpu as pltpu


def _round_up(v, m):
    return ((v + m - 1) // m) * m


# --------------------------------------------------------------------------- #
# Kernel body                                                                 #
# --------------------------------------------------------------------------- #
def _projection_kernel(x_ref, w1_ref, b1_ref, w2r_ref, b2_ref, o_ref):
    """One (TM, in_dim) row tile -> (TM, 1) clipped MOS scores."""
    # Linear(in_dim, hidden) on the MXU, f32 accumulation.
    h = jnp.dot(x_ref[...], w1_ref[...], preferred_element_type=jnp.float32)
    h = jnp.maximum(h + b1_ref[...], 0.0)            # + bias (broadcast), ReLU
    # nn.Dropout(0.3) is identity in eval/inference mode.
    # TODO(synk): training-mode dropout (stochastic mask via pltpu.prng_*) not implemented.
    #
    # Linear(hidden, 1): a 1-column MXU matmul would use 1 of 128/256 MXU
    # columns, so do multiply + lane reduction on the VPU/XLU slots instead
    # (they have plenty of slack in this DMA-bound kernel).
    y = jnp.sum(h * w2r_ref[...], axis=-1, keepdims=True) + b2_ref[...]
    # mos_clip: tanh(y) * 2 + 3  (tanh goes to the EUP slot -> effectively free)
    o_ref[...] = (jnp.tanh(y) * 2.0 + 3.0).astype(o_ref.dtype)


# --------------------------------------------------------------------------- #
# Generation-aware VMEM budgeting                                             #
# --------------------------------------------------------------------------- #
def _vmem_budgets():
    """Returns (streamed-bytes budget per grid step, vmem_limit cap) in bytes."""
    try:
        phys = pltpu.get_tpu_info().vmem_capacity_bytes
    except Exception:
        phys = 64 * 1024 * 1024                       # assume smallest (v7x-class)
    if phys >= 100 * 1024 * 1024:                     # v5e / v6e: 128 MiB physical
        return 40 * 1024 * 1024, 96 * 1024 * 1024
    return 20 * 1024 * 1024, 48 * 1024 * 1024         # v7x: 64 MiB physical


def _per_row_vmem_bytes(in_dim, hidden, x_itemsize):
    """VMEM bytes per tile row, counting real (8,128) lane padding."""
    lanes_x = _round_up(in_dim, 128)
    lanes_h = _round_up(hidden, 128)
    return (2 * lanes_x * x_itemsize      # double-buffered x tile (lane padded)
            + 2 * 128 * 4                 # double-buffered (TM,1) f32 out (lane padded)
            + 2 * lanes_h * 4)            # f32 h intermediate + elementwise temp


def _param_vmem_bytes(in_dim, hidden, w1_itemsize, buffers=2):
    """Resident parameter footprint (counted at `buffers` copies to be safe)."""
    lanes_h = _round_up(hidden, 128)
    return buffers * (_round_up(in_dim, 8) * lanes_h * w1_itemsize   # w1
                      + 2 * 8 * lanes_h * 4                          # b1, w2_row
                      + 8 * 128 * 4)                                 # b2


def _pick_tile_rows(m_rows, in_dim, hidden, x_itemsize, stream_budget_bytes):
    """Byte-targeted row tile: fill the per-generation streaming budget."""
    per_row = _per_row_vmem_bytes(in_dim, hidden, x_itemsize)
    tm = stream_budget_bytes // per_row
    tm = max(16, (tm // 16) * 16)                 # f32 (8,128) and bf16 (16,128) tilings
    tm = min(tm, _round_up(m_rows, 16))           # never pad a small problem to a huge tile
    # Keep >= 2 row tiles when possible so the "parallel" grid axis can be
    # sharded across v7x's two TensorCores (negligible cost on 1-TC parts).
    if m_rows > 16 and pl.cdiv(m_rows, tm) < 2:
        tm = max(16, _round_up(pl.cdiv(m_rows, 2), 16))
    return tm


# --------------------------------------------------------------------------- #
# pallas_call construction + wrapper                                          #
# --------------------------------------------------------------------------- #
def _build_call(M, in_dim, hidden, TM, vmem_limit, cost, single_buffer_params):
    pm = dict(pipeline_mode=pl.Buffered(1)) if single_buffer_params else {}
    return pl.pallas_call(
        _projection_kernel,
        out_shape=jax.ShapeDtypeStruct((M, 1), jnp.float32),
        grid=(pl.cdiv(M, TM),),
        in_specs=[
            # x: streamed, one (TM, in_dim) row block per grid step; the tail
            # block is partial and its OOB rows are masked on store.
            pl.BlockSpec((TM, in_dim), lambda i: (i, 0)),
            # Parameters: constant index maps -> resident, no re-DMA.
            pl.BlockSpec((in_dim, hidden), lambda i: (0, 0), **pm),
            pl.BlockSpec((1, hidden), lambda i: (0, 0), **pm),
            pl.BlockSpec((1, hidden), lambda i: (0, 0), **pm),
            pl.BlockSpec((1, 1), lambda i: (0, 0), **pm),
        ],
        out_specs=pl.BlockSpec((TM, 1), lambda i: (i, 0)),
        compiler_params=pltpu.CompilerParams(
            dimension_semantics=("parallel",),     # row tiles are independent
            vmem_limit_bytes=vmem_limit,
        ),
        cost_estimate=cost,
    )


def projection_layer_forward(x, w1, b1, w2, b2, *, tile_rows=None):
    """Projection_Layer forward (output_type='scalar', mos_clip=True, eval mode).

    x: (B, T, in_dim); w1: (in_dim, hidden); b1: (hidden,); w2: (hidden, 1);
    b2: (1,).  Returns (B, T, 1) float32.

    The matmul runs in x's dtype (pass bf16 activations to halve HBM traffic);
    x is never cast here because a wrapper-side cast would add an extra full
    HBM pass over the dominant stream.  Accumulation stays float32.
    """
    B, T, in_dim = x.shape
    hidden = w1.shape[1]
    out_dim = w2.shape[1]
    assert out_dim == 1, "only output_type='scalar' is implemented"
    M = B * T

    x2d = x.reshape(M, in_dim)
    w1c = w1.astype(x2d.dtype)                              # small; match MXU input dtype
    b1_2d = b1.reshape(1, hidden).astype(jnp.float32)
    w2_row = w2.reshape(1, hidden).astype(jnp.float32)      # (hidden, 1) -> (1, hidden)
    b2_2d = b2.reshape(1, 1).astype(jnp.float32)

    x_item = x2d.dtype.itemsize
    stream_budget, vmem_cap = _vmem_budgets()
    if tile_rows is None:
        TM = _pick_tile_rows(M, in_dim, hidden, x_item, stream_budget)
    else:
        TM = max(16, _round_up(tile_rows, 16))

    vmem_needed = (TM * _per_row_vmem_bytes(in_dim, hidden, x_item)
                   + _param_vmem_bytes(in_dim, hidden, w1c.dtype.itemsize))
    vmem_limit = int(min(vmem_cap, max(32 * 1024 * 1024, (3 * vmem_needed) // 2)))

    cost = pl.CostEstimate(
        flops=2 * M * in_dim * hidden + 3 * M * hidden,
        transcendentals=M,
        bytes_accessed=(M * in_dim * x_item
                        + in_dim * hidden * w1c.dtype.itemsize
                        + (2 * hidden + 1) * 4
                        + M * 4),
    )

    args = (x2d, w1c, b1_2d, w2_row, b2_2d)
    try:
        # Single-buffered resident params (constant index maps) leave more
        # VMEM for x tiles; fall back to default buffering if rejected.
        out = jax.block_until_ready(
            _build_call(M, in_dim, hidden, TM, vmem_limit, cost, True)(*args))
    except Exception:
        out = _build_call(M, in_dim, hidden, TM, vmem_limit, cost, False)(*args)

    return out.reshape(B, T, out_dim)


def init_params(key, in_dim, hidden_dim, out_dim=1):
    """Deterministic PyTorch-style uniform(-1/sqrt(fan_in), 1/sqrt(fan_in)) init."""
    k1, k2, k3, k4 = jax.random.split(key, 4)
    bound1 = 1.0 / jnp.sqrt(in_dim)
    bound2 = 1.0 / jnp.sqrt(hidden_dim)
    w1 = jax.random.uniform(k1, (in_dim, hidden_dim), jnp.float32, -bound1, bound1)
    b1 = jax.random.uniform(k2, (hidden_dim,), jnp.float32, -bound1, bound1)
    w2 = jax.random.uniform(k3, (hidden_dim, out_dim), jnp.float32, -bound2, bound2)
    b2 = jax.random.uniform(k4, (out_dim,), jnp.float32, -bound2, bound2)
    return w1, b1, w2, b2


if __name__ == "__main__":
    # Small shapes consistent with the module; T=9 -> M=18 exercises the
    # masked partial tail block and a >=2-tile "parallel" grid.
    B, T, in_dim, hidden_dim = 2, 9, 32, 32

    key = jax.random.PRNGKey(0)
    kx, kp = jax.random.split(key)
    x = jax.random.normal(kx, (B, T, in_dim), jnp.float32)
    w1, b1, w2, b2 = init_params(kp, in_dim, hidden_dim, out_dim=1)

    # Pure-JAX reference (same math; eval-mode dropout is identity).
    x2 = x.reshape(-1, in_dim)
    ref_h = jnp.maximum(x2 @ w1 + b1, 0.0)
    ref_y = (ref_h * w2.reshape(1, -1)).sum(axis=-1, keepdims=True) + b2
    ref = (jnp.tanh(ref_y) * 2.0 + 3.0).reshape(B, T, 1)

    # f32 activations (auto tile -> TM=16, grid=(2,), masked tail rows 18..31).
    out = projection_layer_forward(x, w1, b1, w2, b2)
    out = jax.block_until_ready(out)
    assert out.shape == (B, T, 1)
    assert jnp.allclose(out, ref, atol=1e-4, rtol=1e-4), "f32 mismatch vs reference"

    # bf16 activations supplied by the caller (kernel never casts x itself).
    out_bf16 = projection_layer_forward(x.astype(jnp.bfloat16), w1, b1, w2, b2)
    out_bf16 = jax.block_until_ready(out_bf16)
    assert jnp.allclose(out_bf16, ref, atol=5e-2, rtol=5e-2), "bf16 mismatch vs reference"

    print("KERNEL_OK")
</pallas_src>

<mosaic_0001>
module attributes {stable_mosaic.version = 11 : i64} {
  func.func @_projection_kernel(%arg0: i32, %arg1: memref<16x32xf32, #tpu.memory_space<vmem>>, %arg2: memref<32x32xf32, #tpu.memory_space<vmem>>, %arg3: memref<1x32xf32, #tpu.memory_space<vmem>>, %arg4: memref<1x32xf32, #tpu.memory_space<vmem>>, %arg5: memref<1x1xf32, #tpu.memory_space<vmem>>, %arg6: memref<16x1xf32, #tpu.memory_space<vmem>>) attributes {dimension_semantics = [#tpu.dimension_semantics<parallel>], iteration_bounds = array<i64: 2>, scalar_prefetch = 0 : i64, scratch_operands = 0 : i64, tpu.core_type = #tpu.core_type<tc>, window_params = [{transform_indices = @transform_0, window_bounds = array<i64: 16, 32>}, {pipeline_mode = #tpu.pipeline_mode<synchronous>, transform_indices = @transform_1, window_bounds = array<i64: 32, 32>}, {pipeline_mode = #tpu.pipeline_mode<synchronous>, transform_indices = @transform_2, window_bounds = array<i64: 1, 32>}, {pipeline_mode = #tpu.pipeline_mode<synchronous>, transform_indices = @transform_3, window_bounds = array<i64: 1, 32>}, {pipeline_mode = #tpu.pipeline_mode<synchronous>, transform_indices = @transform_4, window_bounds = array<i64: 1, 1>}, {transform_indices = @transform_5, window_bounds = array<i64: 16, 1>}]} {
    %c0 = arith.constant 0 : index
    %c0_0 = arith.constant 0 : index
    %0 = vector.load %arg1[%c0, %c0_0] : memref<16x32xf32, #tpu.memory_space<vmem>>, vector<16x32xf32>
    %c0_1 = arith.constant 0 : index
    %c0_2 = arith.constant 0 : index
    %1 = vector.load %arg2[%c0_1, %c0_2] : memref<32x32xf32, #tpu.memory_space<vmem>>, vector<32x32xf32>
    %cst = arith.constant dense<0.000000e+00> : vector<16x32xf32>
    %2 = tpu.matmul %0, %1, %cst {dimension_numbers = #tpu.dot_dimension_numbers<[1], [0], [0], [1], [0, 0, 1, 1], [], []>} : vector<16x32xf32>, vector<32x32xf32>, vector<16x32xf32> -> vector<16x32xf32>
    %c0_3 = arith.constant 0 : index
    %c0_4 = arith.constant 0 : index
    %3 = vector.load %arg3[%c0_3, %c0_4] : memref<1x32xf32, #tpu.memory_space<vmem>>, vector<1x32xf32>
    %4 = vector.broadcast %3 : vector<1x32xf32> to vector<16x32xf32>
    %5 = arith.addf %2, %4 : vector<16x32xf32>
    %cst_5 = arith.constant 0.000000e+00 : f32
    %6 = vector.broadcast %cst_5 : f32 to vector<16x32xf32>
    %7 = arith.maximumf %5, %6 : vector<16x32xf32>
    %c0_6 = arith.constant 0 : index
    %c0_7 = arith.constant 0 : index
    %8 = vector.load %arg4[%c0_6, %c0_7] : memref<1x32xf32, #tpu.memory_space<vmem>>, vector<1x32xf32>
    %9 = vector.broadcast %8 : vector<1x32xf32> to vector<16x32xf32>
    %10 = arith.mulf %7, %9 : vector<16x32xf32>
    %cst_8 = arith.constant dense<0.000000e+00> : vector<16xf32>
    %11 = vector.multi_reduction <add>, %10, %cst_8 [1] : vector<16x32xf32> to vector<16xf32>
    %12 = vector.shape_cast %11 : vector<16xf32> to vector<16x1xf32>
    %c0_9 = arith.constant 0 : index
    %c0_10 = arith.constant 0 : index
    %13 = vector.load %arg5[%c0_9, %c0_10] : memref<1x1xf32, #tpu.memory_space<vmem>>, vector<1x1xf32>
    %14 = vector.broadcast %13 : vector<1x1xf32> to vector<16x1xf32>
    %15 = arith.addf %12, %14 : vector<16x1xf32>
    %16 = math.tanh %15 : vector<16x1xf32>
    %cst_11 = arith.constant 2.000000e+00 : f32
    %17 = vector.broadcast %cst_11 : f32 to vector<16x1xf32>
    %18 = arith.mulf %16, %17 : vector<16x1xf32>
    %cst_12 = arith.constant 3.000000e+00 : f32
    %19 = vector.broadcast %cst_12 : f32 to vector<16x1xf32>
    %20 = arith.addf %18, %19 : vector<16x1xf32>
    %c0_13 = arith.constant 0 : index
    %c0_14 = arith.constant 0 : index
    %21 = vector.load %arg6[%c0_13, %c0_14] : memref<16x1xf32, #tpu.memory_space<vmem>>, vector<16x1xf32>
    tpu.vector_store %arg6[%c0_13, %c0_14], %20 {strides = array<i32>} : memref<16x1xf32, #tpu.memory_space<vmem>>, vector<16x1xf32>,
    return
  }
  func.func @transform_0(%arg0: i32) -> (i32, i32) {
    %c0_i32 = arith.constant 0 : i32
    %c0_i32_0 = arith.constant 0 : i32
    return %arg0, %c0_i32 : i32, i32
  }
  func.func @transform_1(%arg0: i32) -> (i32, i32) {
    %c0_i32 = arith.constant 0 : i32
    %c0_i32_0 = arith.constant 0 : i32
    %c0_i32_1 = arith.constant 0 : i32
    return %c0_i32, %c0_i32_0 : i32, i32
  }
  func.func @transform_2(%arg0: i32) -> (i32, i32) {
    %c0_i32 = arith.constant 0 : i32
    %c0_i32_0 = arith.constant 0 : i32
    %c0_i32_1 = arith.constant 0 : i32
    return %c0_i32, %c0_i32_0 : i32, i32
  }
  func.func @transform_3(%arg0: i32) -> (i32, i32) {
    %c0_i32 = arith.constant 0 : i32
    %c0_i32_0 = arith.constant 0 : i32
    %c0_i32_1 = arith.constant 0 : i32
    return %c0_i32, %c0_i32_0 : i32, i32
  }
  func.func @transform_4(%arg0: i32) -> (i32, i32) {
    %c0_i32 = arith.constant 0 : i32
    %c0_i32_0 = arith.constant 0 : i32
    %c0_i32_1 = arith.constant 0 : i32
    return %c0_i32, %c0_i32_0 : i32, i32
  }
  func.func @transform_5(%arg0: i32) -> (i32, i32) {
    %c0_i32 = arith.constant 0 : i32
    %c0_i32_0 = arith.constant 0 : i32
    return %arg0, %c0_i32 : i32, i32
  }
}

module attributes {stable_mosaic.version = 11 : i64} {
  func.func @_projection_kernel(%arg0: i32, %arg1: memref<16x32xf32, #tpu.memory_space<vmem>>, %arg2: memref<32x32xf32, #tpu.memory_space<vmem>>, %arg3: memref<1x32xf32, #tpu.memory_space<vmem>>, %arg4: memref<1x32xf32, #tpu.memory_space<vmem>>, %arg5: memref<1x1xf32, #tpu.memory_space<vmem>>, %arg6: memref<16x1xf32, #tpu.memory_space<vmem>>) attributes {dimension_semantics = [#tpu.dimension_semantics<parallel>], iteration_bounds = array<i64: 2>, scalar_prefetch = 0 : i64, scratch_operands = 0 : i64, tpu.core_type = #tpu.core_type<tc>, window_params = [{transform_indices = @transform_0, window_bounds = array<i64: 16, 32>}, {pipeline_mode = #tpu.pipeline_mode<synchronous>, transform_indices = @transform_1, window_bounds = array<i64: 32, 32>}, {pipeline_mode = #tpu.pipeline_mode<synchronous>, transform_indices = @transform_2, window_bounds = array<i64: 1, 32>}, {pipeline_mode = #tpu.pipeline_mode<synchronous>, transform_indices = @transform_3, window_bounds = array<i64: 1, 32>}, {pipeline_mode = #tpu.pipeline_mode<synchronous>, transform_indices = @transform_4, window_bounds = array<i64: 1, 1>}, {transform_indices = @transform_5, window_bounds = array<i64: 16, 1>}]} {
    %c0 = arith.constant 0 : index
    %c0_0 = arith.constant 0 : index
    %0 = vector.load %arg1[%c0, %c0_0] : memref<16x32xf32, #tpu.memory_space<vmem>>, vector<16x32xf32>
    %c0_1 = arith.constant 0 : index
    %c0_2 = arith.constant 0 : index
    %1 = vector.load %arg2[%c0_1, %c0_2] : memref<32x32xf32, #tpu.memory_space<vmem>>, vector<32x32xf32>
    %cst = arith.constant dense<0.000000e+00> : vector<16x32xf32>
    %2 = tpu.matmul %0, %1, %cst {dimension_numbers = #tpu.dot_dimension_numbers<[1], [0], [0], [1], [0, 0, 1, 1], [], []>} : vector<16x32xf32>, vector<32x32xf32>, vector<16x32xf32> -> vector<16x32xf32>
    %c0_3 = arith.constant 0 : index
    %c0_4 = arith.constant 0 : index
    %3 = vector.load %arg3[%c0_3, %c0_4] : memref<1x32xf32, #tpu.memory_space<vmem>>, vector<1x32xf32>
    %4 = vector.broadcast %3 : vector<1x32xf32> to vector<16x32xf32>
    %5 = arith.addf %2, %4 : vector<16x32xf32>
    %cst_5 = arith.constant 0.000000e+00 : f32
    %6 = vector.broadcast %cst_5 : f32 to vector<16x32xf32>
    %7 = arith.maximumf %5, %6 : vector<16x32xf32>
    %c0_6 = arith.constant 0 : index
    %c0_7 = arith.constant 0 : index
    %8 = vector.load %arg4[%c0_6, %c0_7] : memref<1x32xf32, #tpu.memory_space<vmem>>, vector<1x32xf32>
    %9 = vector.broadcast %8 : vector<1x32xf32> to vector<16x32xf32>
    %10 = arith.mulf %7, %9 : vector<16x32xf32>
    %cst_8 = arith.constant dense<0.000000e+00> : vector<16xf32>
    %11 = vector.multi_reduction <add>, %10, %cst_8 [1] : vector<16x32xf32> to vector<16xf32>
    %12 = vector.shape_cast %11 : vector<16xf32> to vector<16x1xf32>
    %c0_9 = arith.constant 0 : index
    %c0_10 = arith.constant 0 : index
    %13 = vector.load %arg5[%c0_9, %c0_10] : memref<1x1xf32, #tpu.memory_space<vmem>>, vector<1x1xf32>
    %14 = vector.broadcast %13 : vector<1x1xf32> to vector<16x1xf32>
    %15 = arith.addf %12, %14 : vector<16x1xf32>
    %16 = math.tanh %15 : vector<16x1xf32>
    %cst_11 = arith.constant 2.000000e+00 : f32
    %17 = vector.broadcast %cst_11 : f32 to vector<16x1xf32>
    %18 = arith.mulf %16, %17 : vector<16x1xf32>
    %cst_12 = arith.constant 3.000000e+00 : f32
    %19 = vector.broadcast %cst_12 : f32 to vector<16x1xf32>
    %20 = arith.addf %18, %19 : vector<16x1xf32>
    %c0_13 = arith.constant 0 : index
    %c0_14 = arith.constant 0 : index
    %21 = vector.load %arg6[%c0_13, %c0_14] : memref<16x1xf32, #tpu.memory_space<vmem>>, vector<16x1xf32>
    tpu.vector_store %arg6[%c0_13, %c0_14], %20 {strides = array<i32>} : memref<16x1xf32, #tpu.memory_space<vmem>>, vector<16x1xf32>,
    return
  }
  func.func @transform_0(%arg0: i32) -> (i32, i32) {
    %c0_i32 = arith.constant 0 : i32
    %c0_i32_0 = arith.constant 0 : i32
    return %arg0, %c0_i32 : i32, i32
  }
  func.func @transform_1(%arg0: i32) -> (i32, i32) {
    %c0_i32 = arith.constant 0 : i32
    %c0_i32_0 = arith.constant 0 : i32
    %c0_i32_1 = arith.constant 0 : i32
    return %c0_i32, %c0_i32_0 : i32, i32
  }
  func.func @transform_2(%arg0: i32) -> (i32, i32) {
    %c0_i32 = arith.constant 0 : i32
    %c0_i32_0 = arith.constant 0 : i32
    %c0_i32_1 = arith.constant 0 : i32
    return %c0_i32, %c0_i32_0 : i32, i32
  }
  func.func @transform_3(%arg0: i32) -> (i32, i32) {
    %c0_i32 = arith.constant 0 : i32
    %c0_i32_0 = arith.constant 0 : i32
    %c0_i32_1 = arith.constant 0 : i32
    return %c0_i32, %c0_i32_0 : i32, i32
  }
  func.func @transform_4(%arg0: i32) -> (i32, i32) {
    %c0_i32 = arith.constant 0 : i32
    %c0_i32_0 = arith.constant 0 : i32
    %c0_i32_1 = arith.constant 0 : i32
    return %c0_i32, %c0_i32_0 : i32, i32
  }
  func.func @transform_5(%arg0: i32) -> (i32, i32) {
    %c0_i32 = arith.constant 0 : i32
    %c0_i32_0 = arith.constant 0 : i32
    return %arg0, %c0_i32 : i32, i32
  }
}

</mosaic_0001>

<llo_original>
// kernel: tpu_custom_call.1
$region0: #{tpu_custom_call.1}
  #allocation0 [shape = 'u32[]', space=smem, size = 0x4, offset = 0x4, fixed_abs, tag = 'smem constant byte address 0x4 - core index']
  #allocation1 [shape = 'u32[144,128]{1,0:T(1,128)}', space=vmem, size = 0x12000, scoped, tag = 'internal scratch']
  #allocation2 [shape = 'f32[1,1]{1,0:T(1,128)S(1)}', space=vmem, size = 0x200, scoped, tag = 'scoped memory for tpu_custom_call.1']
  %s0 = inlined_call_operand.hbm [shape: f32[18,32], index: 0, kind: input, shape index: {}]
  %s1 = inlined_call_operand.hbm [shape: f32[32,32], index: 1, kind: input, shape index: {}]
  %s2 = inlined_call_operand.vmem [shape: f32[1,32], index: 2, kind: input, shape index: {}]
  %s3 = inlined_call_operand.vmem [shape: f32[1,32], index: 3, kind: input, shape index: {}]
  %s4 = inlined_call_operand.<no memory space> [shape: f32[1,1], index: 4, kind: input, shape index: {}]
  %s5 = inlined_call_operand.vmem [shape: f32[18,1], index: 5, kind: output, shape index: {}]
  %s6 = sld [smem:[#allocation0]]
  $region109: #{tpu_custom_call.1} parent=0
    _
  %s8 = ssub.s32 1, %s6
  %s9 = scalar_select 0, %s8, %s6
  %v10 = vstv %s4
  %11 = vst [vmem:[#allocation2] sm:$0x1] %v10
  $region1: #{tpu_custom_call.1} parent=0
    #allocation3 [shape = 'u8[16384]{0}', space=vmem, size = 0x4000, scoped, tag = 'input window, operand 0']
    #allocation4 [shape = 's32[2]{0}', space=sflag, size = 0x8, scoped, tag = 'scoped memory for tpu_custom_call.1']
    #allocation5 [shape = 'u8[16384]{0}', space=vmem, size = 0x4000, scoped, tag = 'input window, operand 1, single buffered']
    #allocation6 [shape = 's32[1]{0}', space=sflag, size = 0x4, scoped, tag = 'scoped memory for tpu_custom_call.1']
    #allocation7 [shape = 'u8[16384]{0}', space=vmem, size = 0x4000, scoped, tag = 'output window, operand 0']
    %12 = vsyncpa [#allocation4], 0
    %s13 = scalar_lea.sflag [#allocation4], 1
    %14 = vsyncpa %s13, 0
    %15 = vsyncpa [#allocation6], 0
    loop: start=0, step=1, limit=4
    $region2: #{tpu_custom_call.1} parent=1 // loop_pre_header
      _
    $region3: #{tpu_custom_call.1} parent=1 // loop_header
      %s17 = sphi 0, %s21
      %p18 = scmp.ge.s32.totalorder %s17, 4
      %s27 = sphi 0, %s29
      %s30 = sphi 0, %s27
      %s31 = sphi 0, %s30
      %s47 = sphi 0, %s31
      %s51 = sphi 0, %s51
      %s53 = sphi 0, %s51
      %s54 = sphi 0, %s53
      %s68 = sphi 0, %s54
      %s72 = sphi 0, %s72
      %s74 = sphi 0, %s72
      %s75 = sphi 0, %s74
      %s89 = sphi 0, %s75
      %s93 = sphi 0, %s93
      %s95 = sphi 0, %s93
      %s96 = sphi 0, %s95
      %s110 = sphi 0, %s96
      %s114 = sphi 0, %s114
      %s116 = sphi 0, %s114
      %s117 = sphi 0, %s116
      %s131 = sphi 0, %s117
      %s137 = sphi 0, %s139
      %s140 = sphi 0, %s137
      %s141 = sphi 0, %s140
      %s157 = sphi 0, %s141
    $region4: #{tpu_custom_call.1} parent=1 // loop_header_branch
      %20 = sbr.rel (%p18) target = $region8
    $region5: #{tpu_custom_call.1} parent=1 // loop_body
      %s22 = ssub.s32 %s17, 1
      %s23 = ssub.s32 %s17, 2
      %s24 = sadd.s32 %s17, 1
      %s25 = ssub.s32 %s17, %s24
      %p26 = scmp.eq.s32.totalorder %s25, 0
      %s28 = sadd.s32 %s27, 1
      %s29 = scalar_select %p26, %s27, %s28
      %p32 = pneg %p26
      %p33 = scmp.eq.s32.totalorder %s17, 1
      %p34 = por %p32, %p33
      %p35 = scmp.ne.s32.totalorder %s27, %s30
      %p36 = scmp.eq.s32.totalorder %s17, 0
      %p37 = por %p35, %p36
      %p38 = scmp.ne.s32.totalorder %s27, %s30
      %p39 = scmp.eq.s32.totalorder %s22, 1
      %p40 = por %p38, %p39
      %p41 = scmp.ne.s32.totalorder %s30, %s31
      %p42 = scmp.eq.s32.totalorder %s22, 0
      %p43 = por %p41, %p42
      %p44 = scmp.ne.s32.totalorder %s30, %s31
      %p45 = scmp.eq.s32.totalorder %s23, 1
      %p46 = por %p44, %p45
      %p48 = scmp.ne.s32.totalorder %s31, %s47
      %p49 = scmp.eq.s32.totalorder %s23, 0
      %p50 = por %p48, %p49
      %s52 = sadd.s32 %s51, 1
      %p55 = scmp.eq.s32.totalorder %s17, 1
      %p56 = scmp.ne.s32.totalorder %s51, %s53
      %p57 = scmp.eq.s32.totalorder %s17, 0
      %p58 = por %p56, %p57
      %p59 = scmp.ne.s32.totalorder %s51, %s53
      %p60 = scmp.eq.s32.totalorder %s22, 1
      %p61 = por %p59, %p60
      %p62 = scmp.ne.s32.totalorder %s53, %s54
      %p63 = scmp.eq.s32.totalorder %s22, 0
      %p64 = por %p62, %p63
      %p65 = scmp.ne.s32.totalorder %s53, %s54
      %p66 = scmp.eq.s32.totalorder %s23, 1
      %p67 = por %p65, %p66
      %p69 = scmp.ne.s32.totalorder %s54, %s68
      %p70 = scmp.eq.s32.totalorder %s23, 0
      %p71 = por %p69, %p70
      %s73 = sadd.s32 %s72, 1
      %p76 = scmp.eq.s32.totalorder %s17, 1
      %p77 = scmp.ne.s32.totalorder %s72, %s74
      %p78 = scmp.eq.s32.totalorder %s17, 0
      %p79 = por %p77, %p78
      %p80 = scmp.ne.s32.totalorder %s72, %s74
      %p81 = scmp.eq.s32.totalorder %s22, 1
      %p82 = por %p80, %p81
      %p83 = scmp.ne.s32.totalorder %s74, %s75
      %p84 = scmp.eq.s32.totalorder %s22, 0
      %p85 = por %p83, %p84
      %p86 = scmp.ne.s32.totalorder %s74, %s75
      %p87 = scmp.eq.s32.totalorder %s23, 1
      %p88 = por %p86, %p87
      %p90 = scmp.ne.s32.totalorder %s75, %s89
      %p91 = scmp.eq.s32.totalorder %s23, 0
      %p92 = por %p90, %p91
      %s94 = sadd.s32 %s93, 1
      %p97 = scmp.eq.s32.totalorder %s17, 1
      %p98 = scmp.ne.s32.totalorder %s93, %s95
      %p99 = scmp.eq.s32.totalorder %s17, 0
      %p100 = por %p98, %p99
      %p101 = scmp.ne.s32.totalorder %s93, %s95
      %p102 = scmp.eq.s32.totalorder %s22, 1
      %p103 = por %p101, %p102
      %p104 = scmp.ne.s32.totalorder %s95, %s96
      %p105 = scmp.eq.s32.totalorder %s22, 0
      %p106 = por %p104, %p105
      %p107 = scmp.ne.s32.totalorder %s95, %s96
      %p108 = scmp.eq.s32.totalorder %s23, 1
      %p109 = por %p107, %p108
      %p111 = scmp.ne.s32.totalorder %s96, %s110
      %p112 = scmp.eq.s32.totalorder %s23, 0
      %p113 = por %p111, %p112
      %s115 = sadd.s32 %s114, 1
      %p118 = scmp.eq.s32.totalorder %s17, 1
      %p119 = scmp.ne.s32.totalorder %s114, %s116
      %p120 = scmp.eq.s32.totalorder %s17, 0
      %p121 = por %p119, %p120
      %p122 = scmp.ne.s32.totalorder %s114, %s116
      %p123 = scmp.eq.s32.totalorder %s22, 1
      %p124 = por %p122, %p123
      %p125 = scmp.ne.s32.totalorder %s116, %s117
      %p126 = scmp.eq.s32.totalorder %s22, 0
      %p127 = por %p125, %p126
      %p128 = scmp.ne.s32.totalorder %s116, %s117
      %p129 = scmp.eq.s32.totalorder %s23, 1
      %p130 = por %p128, %p129
      %p132 = scmp.ne.s32.totalorder %s117, %s131
      %p133 = scmp.eq.s32.totalorder %s23, 0
      %p134 = por %p132, %p133
      %s135 = ssub.s32 %s17, %s24
      %p136 = scmp.eq.s32.totalorder %s135, 0
      %s138 = sadd.s32 %s137, 1
      %s139 = scalar_select %p136, %s137, %s138
      %p142 = pneg %p136
      %p143 = scmp.eq.s32.totalorder %s17, 1
      %p144 = por %p142, %p143
      %p145 = scmp.ne.s32.totalorder %s137, %s140
      %p146 = scmp.eq.s32.totalorder %s17, 0
      %p147 = por %p145, %p146
      %p148 = scmp.ne.s32.totalorder %s137, %s140
      %p149 = scmp.eq.s32.totalorder %s22, 1
      %p150 = por %p148, %p149
      %p151 = scmp.ne.s32.totalorder %s140, %s141
      %p152 = scmp.eq.s32.totalorder %s22, 0
      %p153 = por %p151, %p152
      %p154 = scmp.ne.s32.totalorder %s140, %s141
      %p155 = scmp.eq.s32.totalorder %s23, 1
      %p156 = por %p154, %p155
      %p158 = scmp.ne.s32.totalorder %s141, %s157
      %p159 = scmp.eq.s32.totalorder %s23, 0
      %p160 = por %p158, %p159
      %p161 = scmp.le.s32.totalorder 1, %s17
      %p162 = scmp.lt.s32.totalorder %s17, 3
      %p163 = pnand %p161, %p162
      %p164 = pneg %p163
      // Predicated region
      $region9: #{tpu_custom_call.1} parent=5 // pred_check
        _
      $region10: #{tpu_custom_call.1} parent=5 // pred_check_branch
        %166 = sbr.rel (%p163) target = $region12
      $region11: #{tpu_custom_call.1} parent=5 // pred_region
        %s167 = ssub.s32 %s17, 1
        // Predicated region
        $region13: #{tpu_custom_call.1} parent=11 // pred_check
          %p168 = pneg %p64
        $region14: #{tpu_custom_call.1} parent=11 // pred_check_branch
          %170 = sbr.rel (%p168) target = $region16
        $region15: #{tpu_custom_call.1} parent=11 // pred_region
          %s172 = ssub.s32 512, 512
          %173 = vsyncadd [#allocation6], %s172
          %s174 = sshll.u32 [#allocation5], 4
          %s175 = int_to_ptr.vmem [resolvable:$true] %s174
          %180 = dma.hbm_to_vmem [thread:$0]  %s1, 512, %s175, [#allocation6], 128, 128, 8
        $region16: #{tpu_custom_call.1} parent=11 // pred_fallthru
          _
        // Predicated region
        $region17: #{tpu_custom_call.1} parent=11 // pred_check
          %p181 = pneg %p85
        $region18: #{tpu_custom_call.1} parent=11 // pred_check_branch
          %183 = sbr.rel (%p181) target = $region20
        $region19: #{tpu_custom_call.1} parent=11 // pred_region
          _
        $region20: #{tpu_custom_call.1} parent=11 // pred_fallthru
          _
        // Predicated region
        $region21: #{tpu_custom_call.1} parent=11 // pred_check
          %p184 = pneg %p106
        $region22: #{tpu_custom_call.1} parent=11 // pred_check_branch
          %186 = sbr.rel (%p184) target = $region24
        $region23: #{tpu_custom_call.1} parent=11 // pred_region
          _
        $region24: #{tpu_custom_call.1} parent=11 // pred_fallthru
          _
        // Predicated region
        $region25: #{tpu_custom_call.1} parent=11 // pred_check
          %p187 = pneg %p127
        $region26: #{tpu_custom_call.1} parent=11 // pred_check_branch
          %189 = sbr.rel (%p187) target = $region28
        $region27: #{tpu_custom_call.1} parent=11 // pred_region
          _
        $region28: #{tpu_custom_call.1} parent=11 // pred_fallthru
          _
      $region12: #{tpu_custom_call.1} parent=5 // pred_fallthru
        _
      %p190 = scmp.lt.s32.totalorder %s17, 2
      // Predicated region
      $region29: #{tpu_custom_call.1} parent=5 // pred_check
        %p191 = pneg %p190
      $region30: #{tpu_custom_call.1} parent=5 // pred_check_branch
        %193 = sbr.rel (%p191) target = $region32
      $region31: #{tpu_custom_call.1} parent=5 // pred_region
        // Predicated region
        $region33: #{tpu_custom_call.1} parent=31 // pred_check
          %p194 = pneg %p37
        $region34: #{tpu_custom_call.1} parent=31 // pred_check_branch
          %196 = sbr.rel (%p194) target = $region36
        $region35: #{tpu_custom_call.1} parent=31 // pred_region
          %s197 = sand.u32 %s27, 1
          %s198 = scalar_lea.sflag [#allocation4], %s197
          %s199 = sand.u32 %s27, 1
          %s200 = smul.addr %s199, 16
          %s201 = scalar_lea.vmem [#allocation3], %s200
          %s202 = smul.u32 2, %s17
          %s203 = ssub.s32 3, %s202
          %p204 = scmp.lt.s32.totalorder %s203, 2
          %s205 = scalar_select %p204, %s203, 2
          %s206 = smul.u32 128, %s205
          %s208 = ssub.s32 256, %s206
          %209 = vsyncadd %s198, %s208
          %p210 = scmp.ne.s32.totalorder 0, %s206
          %s211 = smul.addr %s202, 128
          %s212 = scalar_lea.hbm %s0, %s211
          %s213 = smul.u32 8, %s205
          %s214 = sshll.u32 %s201, 4
          %s215 = int_to_ptr.vmem [resolvable:$true] %s214
          %s216 = sshll.u32 %s213, 4
          %220 = dma.hbm_to_vmem [thread:$0]  (%p210), %s212, %s216, %s215, %s198, 128, 128, 8
        $region36: #{tpu_custom_call.1} parent=31 // pred_fallthru
          _
      $region32: #{tpu_custom_call.1} parent=5 // pred_fallthru
        _
      %p221 = scmp.le.s32.totalorder 1, %s17
      %p222 = scmp.lt.s32.totalorder %s17, 3
      %p223 = pnand %p221, %p222
      %p224 = pneg %p223
      // Predicated region
      $region37: #{tpu_custom_call.1} parent=5 // pred_check
        _
      $region38: #{tpu_custom_call.1} parent=5 // pred_check_branch
        %226 = sbr.rel (%p223) target = $region40
      $region39: #{tpu_custom_call.1} parent=5 // pred_region
        %s227 = ssub.s32 %s17, 1
        %s228 = sand.u32 %s30, 1
        %s229 = scalar_lea.sflag [#allocation4], %s228
        %s230 = sand.u32 %s30, 1
        %s231 = smul.addr %s230, 16
        %s232 = scalar_lea.vmem [#allocation3], %s231
        // Predicated region
        $region41: #{tpu_custom_call.1} parent=39 // pred_check
          %p233 = pneg %p43
        $region42: #{tpu_custom_call.1} parent=39 // pred_check_branch
          %235 = sbr.rel (%p233) target = $region44
        $region43: #{tpu_custom_call.1} parent=39 // pred_region
          %236 = dma.done %s229, 256
        $region44: #{tpu_custom_call.1} parent=39 // pred_fallthru
          _
        // Predicated region
        $region45: #{tpu_custom_call.1} parent=39 // pred_check
          %p237 = pneg %p64
        $region46: #{tpu_custom_call.1} parent=39 // pred_check_branch
          %239 = sbr.rel (%p237) target = $region48
        $region47: #{tpu_custom_call.1} parent=39 // pred_region
          %240 = dma.done [#allocation6], 512
        $region48: #{tpu_custom_call.1} parent=39 // pred_fallthru
          _
        %s241 = sand.u32 %s30, 1
        %s242 = scalar_lea.sflag [#allocation4], %s241
        %s243 = sand.u32 %s30, 1
        %s244 = smul.addr %s243, 16
        %s245 = scalar_lea.vmem [#allocation3], %s244
        %p246 = pneg %p43
        %p247 = pneg %p40
        %p248 = pneg %p64
        %p249 = pneg %p61
        %p250 = pneg %p85
        %p251 = pneg %p82
        %p252 = pneg %p106
        %p253 = pneg %p103
        %p254 = pneg %p127
        %p255 = pneg %p124
        %p256 = pneg %p153
        %p257 = pneg %p150
        %s258 = sand.u32 %s140, 1
        %s259 = sand.u32 %s140, 1
        %s260 = smul.addr %s259, 16
        %s261 = scalar_lea.vmem [#allocation7], %s260
        %s262 = smul.u32 2, %s22
        %s263 = ssub.s32 3, %s262
        %p264 = scmp.lt.s32.totalorder %s263, 2
        %s265 = scalar_select %p264, %s263, 2
        %s266 = smul.u32 128, %s265
        %s267 = smul.u32 2, %s22
        %s268 = ssub.s32 3, %s267
        %p269 = scmp.lt.s32.totalorder %s268, 2
        %s270 = scalar_select %p269, %s268, 2
        %s271 = smul.u32 128, %s270
        %v272 = vld [vmem:[%s232] sm:$0xff]
        %v273 = vld [vmem:[%s232 + $0x8] sm:$0xff]
        %v274 = vld [vmem:[#allocation5] sm:$0xff]
        %v275 = vld [vmem:[#allocation5 + $0x8] sm:$0xff]
        %v276 = vld [vmem:[#allocation5 + $0x10] sm:$0xff]
        %v277 = vld [vmem:[#allocation5 + $0x18] sm:$0xff]
        %v278 = vld [vmem:[%s2] sm:$0x1]
        %v280 = vlaneseq
        %v281 = vshrl.u32 %v280, 7
        %v282 = vsub.s32 0, %v281
        %v283 = vrot.slane %v278, %v282
        %vm285 = vcmask 261120
        %v287 = vsel %vm285, %v272, 0
        %v290 = vsel %vm285, %v273, 0
        %292 = vmatprep.subr.mxu0 0.0
        %293 = vmatpush1.msra.mxu0 %v274
        %294 = vmatprep.subr.mxu0 0.0
        %295 = vmatpush1.msra.mxu0 %v275
        %296 = vmatprep.subr.mxu0 0.0
        %297 = vmatpush1.msra.mxu0 %v276
        %298 = vmatprep.subr.mxu0 0.0
        %299 = vmatpush1.msra.mxu0 %v277
        %300 = vmatprep.subr.mxu0 0.0
        %301 = vmatpush1.msra.mxu0 0.0
        %302 = vmatprep.subr.mxu0 0.0
        %303 = vmatpush1.msra.mxu0 0.0
        %304 = vmatprep.subr.mxu0 0.0
        %305 = vmatpush1.msra.mxu0 0.0
        %306 = vmatprep.subr.mxu0 0.0
        %307 = vmatpush1.msra.mxu0 0.0
        %308 = vmatprep.subr.mxu0 0.0
        %309 = vmatpush1.msra.mxu0 0.0
        %310 = vmatprep.subr.mxu0 0.0
        %311 = vmatpush1.msra.mxu0 0.0
        %312 = vmatprep.subr.mxu0 0.0
        %313 = vmatpush1.msra.mxu0 0.0
        %314 = vmatprep.subr.mxu0 0.0
        %315 = vmatpush1.msra.mxu0 0.0
        %316 = vmatprep.subr.mxu0 0.0
        %317 = vmatpush1.msra.mxu0 0.0
        %318 = vmatprep.subr.mxu0 0.0
        %319 = vmatpush1.msra.mxu0 0.0
        %320 = vmatprep.subr.mxu0 0.0
        %321 = vmatpush1.msra.mxu0 0.0
        %322 = vmatprep.subr.mxu0 0.0
        %323 = vmatpush1.msra.mxu0 0.0
        %324 = vmatprep.subr.mxu0 0.0
        %325 = vmatpush1.msra.mxu0 0.0
        %326 = vmatprep.subr.mxu0 0.0
        %327 = vmatpush1.msra.mxu0 0.0
        %328 = vmatprep.subr.mxu0 0.0
        %329 = vmatpush1.msra.mxu0 0.0
        %330 = vmatprep.subr.mxu0 0.0
        %331 = vmatpush1.msra.mxu0 0.0
        %332 = vmatprep.subr.mxu0 0.0
        %333 = vmatpush1.msra.mxu0 0.0
        %334 = vmatprep.subr.mxu0 0.0
        %335 = vmatpush1.msra.mxu0 0.0
        %336 = vmatprep.subr.mxu0 0.0
        %337 = vmatpush1.msra.mxu0 0.0
        %338 = vmatprep.subr.mxu0 0.0
        %339 = vmatpush1.msra.mxu0 0.0
        %340 = vmatprep.subr.mxu0 0.0
        %341 = vmatpush1.msra.mxu0 0.0
        %342 = vmatprep.subr.mxu0 0.0
        %343 = vmatpush1.msra.mxu0 0.0
        %344 = vmatprep.subr.mxu0 0.0
        %345 = vmatpush1.msra.mxu0 0.0
        %346 = vmatprep.subr.mxu0 0.0
        %347 = vmatpush1.msra.mxu0 0.0
        %348 = vmatprep.subr.mxu0 0.0
        %349 = vmatpush1.msra.mxu0 0.0
        %350 = vmatprep.subr.mxu0 0.0
        %351 = vmatpush1.msra.mxu0 0.0
        %352 = vmatprep.subr.mxu0 0.0
        %353 = vmatpush1.msra.mxu0 0.0
        %354 = vmatprep.subr.mxu0 0.0
        %355 = vmatpush1.msra.mxu0 0.0
        %356 = vmatprep.mubr.f32.mxu0 0.0
        %357 = vmatmul.mubr.f32.gmra.mrb[0].mxu0 %v287
        %v358 = vpop.f32.mrb[0].mxu0
        %v359 = vadd.f32 %v283, %v358
        %v360 = vpop.f32.mrb[0].mxu0
        %361 = vmatprep.mubr.f32.mxu0 0.0
        %362 = vmatmul.mubr.f32.gmra.mrb[0].mxu0 %v290
        %v363 = vpop.f32.mrb[0].mxu0
        %v364 = vadd.f32 %v283, %v363
        %v365 = vpop.f32.mrb[0].mxu0
        %366 = vdwg.mxu0
        %v367 = vmax.f32 %v359, 0.0
        %v368 = vmax.f32 %v364, 0.0
        %v369 = vld [vmem:[%s3] sm:$0x1]
        %v371 = vlaneseq
        %v372 = vshrl.u32 %v371, 7
        %v373 = vsub.s32 0, %v372
        %v374 = vrot.slane %v369, %v373
        %v376 = vmul.f32 %v367, %v374
        %v377 = vmul.f32 %v368, %v374
        %v378 = vsel %vm285, %v376, 0.0
        %379 = vadd.xlane.f32.xlu0 %v378
        %v380 = vpop.xlane.xlu0 %379
        %v381 = vsel %vm285, %v377, 0.0
        %382 = vadd.xlane.f32.xlu0 %v381
        %v383 = vpop.xlane.xlu0 %382
        %v384 = vld [vmem:[#allocation2] sm:$0x1]
        %v386 = vlaneseq
        %v387 = vshrl.u32 %v386, 7
        %v388 = vsub.s32 0, %v387
        %v389 = vrot.slane %v384, %v388
        %v391 = vadd.f32 %v380, %v389
        %v392 = vadd.f32 %v383, %v389
        %v393 = vtanh.pop %v391
        %v394 = vtanh.pop %v392
        %v395 = vmul.f32 %v393, 2.0
        %v396 = vmul.f32 %v394, 2.0
        %v397 = vadd.f32 %v395, 3.0
        %v398 = vadd.f32 %v396, 3.0
        %vm399 = vcmask 7168
        %400 = vst.msk [vmem:[%s261] sm:$0xff] %vm399, %v397
        %401 = vst.msk [vmem:[%s261 + $0x8] sm:$0xff] %vm399, %v398
        %s402 = sand.u32 %s140, 1
        %s403 = sand.u32 %s140, 1
        %s404 = smul.addr %s403, 16
        %s405 = scalar_lea.vmem [#allocation7], %s404
        // Predicated region
        $region49: #{tpu_custom_call.1} parent=39 // pred_check
          %p406 = pneg %p150
        $region50: #{tpu_custom_call.1} parent=39 // pred_check_branch
          %408 = sbr.rel (%p406) target = $region52
        $region51: #{tpu_custom_call.1} parent=39 // pred_region
          %s409 = smul.u32 2, %s22
          %s410 = ssub.s32 3, %s409
          %p411 = scmp.lt.s32.totalorder %s410, 2
          %s412 = scalar_select %p411, %s410, 2
          %s413 = smul.u32 128, %s412
          %p414 = scmp.ne.s32.totalorder 0, %s413
          %s415 = smul.addr %s409, 8
          %s416 = scalar_lea.vmem %s5, %s415
          // Predicated region
          $region53: #{tpu_custom_call.1} parent=51 // pred_check
            %p417 = pneg %p414
          $region54: #{tpu_custom_call.1} parent=51 // pred_check_branch
            %419 = sbr.rel (%p417) target = $region56
          $region55: #{tpu_custom_call.1} parent=51 // pred_region
            // Predicated region
            $region57: #{tpu_custom_call.1} parent=55 // pred_check
              _
            $region58: #{tpu_custom_call.1} parent=55 // pred_check_branch
              %421 = sbr.rel (0) target = $region60
            $region59: #{tpu_custom_call.1} parent=55 // pred_region
              // Predicated region
              $region79: #{tpu_custom_call.1} parent=59 // pred_check
                _
              $region80: #{tpu_custom_call.1} parent=59 // pred_check_branch
                %472 = sbr.rel (0) target = $region82
              $region81: #{tpu_custom_call.1} parent=59 // pred_region
                %s473 = sshrl.u32 %s412, 1
                // While loop
                $region83: #{tpu_custom_call.1} parent=81 // loop_pre_header
                  _
                $region84: #{tpu_custom_call.1} parent=81 // loop_header
                  %s475 = sphi 0, %s477
                  %p476 = scmp.ge.s32.totalorder %s475, %s473
                  %s480 = sphi 0, %s489
                  %s481 = sphi %s405, %s492
                  %s482 = sphi %s416, %s493
                $region85: #{tpu_custom_call.1} parent=81 // loop_header_branch
                  %479 = sbr.rel (%p476) target = $region89
                $region86: #{tpu_custom_call.1} parent=81 // loop_body
                  %v483 = vld [vmem:[%s481] sm:$0xff]
                  %484 = vst [vmem:[%s482] sm:$0xff] %v483
                  %v485 = vld [vmem:[%s481 + $0x8] sm:$0xff]
                  %486 = vst [vmem:[%s482 + $0x8] sm:$0xff] %v485
                  %s487 = sadd.s32 1, %s480
                  %p488 = scmp.ge.s32.totalorder %s487, %s473
                  %s489 = scalar_select %p488, 0, %s487
                  %s490 = smul.u32 %s489, 16
                  %s491 = smul.u32 %s489, 16
                  %s492 = scalar_lea.vmem %s405, %s490 [#allocation7]
                  %s493 = scalar_lea.vmem %s416, %s491
                $region87: #{tpu_custom_call.1} parent=81 // loop_footer
                  %s477 = sadd.s32 %s475, 1
                $region88: #{tpu_custom_call.1} parent=81 // loop_footer_branch
                  %474 = sbr.rel target = $region84
                $region89: #{tpu_custom_call.1} parent=81 // loop_exit
                  _
                %s494 = sshrl.u32 %s412, 1
                %s495 = sand.u32 %s412, 1
                %s496 = smul.u32 %s494, 2
                %s497 = smul.u32 8, %s496
                %s498 = scalar_lea.vmem %s405, %s497 [#allocation7]
                %s499 = smul.u32 8, %s496
                %s500 = scalar_lea.vmem %s416, %s499
                // While loop
                $region90: #{tpu_custom_call.1} parent=81 // loop_pre_header
                  _
                $region91: #{tpu_custom_call.1} parent=81 // loop_header
                  %s502 = sphi 0, %s504
                  %p503 = scmp.ge.s32.totalorder %s502, %s495
                  %s507 = sphi 0, %s514
                  %s508 = sphi %s498, %s517
                  %s509 = sphi %s500, %s518
                $region92: #{tpu_custom_call.1} parent=81 // loop_header_branch
                  %506 = sbr.rel (%p503) target = $region96
                $region93: #{tpu_custom_call.1} parent=81 // loop_body
                  %v510 = vld [vmem:[%s508] sm:$0xff]
                  %511 = vst [vmem:[%s509] sm:$0xff] %v510
                  %s512 = sadd.s32 1, %s507
                  %p513 = scmp.ge.s32.totalorder %s512, %s495
                  %s514 = scalar_select %p513, 0, %s512
                  %s515 = smul.u32 %s514, 8
                  %s516 = smul.u32 %s514, 8
                  %s517 = scalar_lea.vmem %s498, %s515 [#allocation7]
                  %s518 = scalar_lea.vmem %s500, %s516
                $region94: #{tpu_custom_call.1} parent=81 // loop_footer
                  %s504 = sadd.s32 %s502, 1
                $region95: #{tpu_custom_call.1} parent=81 // loop_footer_branch
                  %501 = sbr.rel target = $region91
                $region96: #{tpu_custom_call.1} parent=81 // loop_exit
                  _
              $region82: #{tpu_custom_call.1} parent=59 // pred_fallthru
                _
              // Predicated region
              $region97: #{tpu_custom_call.1} parent=59 // pred_check
                _
              $region98: #{tpu_custom_call.1} parent=59 // pred_check_branch
                %520 = sbr.rel target = $region100
              $region99: #{tpu_custom_call.1} parent=59 // pred_region
                _
              $region100: #{tpu_custom_call.1} parent=59 // pred_fallthru
                _
            $region60: #{tpu_custom_call.1} parent=55 // pred_fallthru
              _
            // Predicated region
            $region61: #{tpu_custom_call.1} parent=55 // pred_check
              _
            $region62: #{tpu_custom_call.1} parent=55 // pred_check_branch
              %423 = sbr.rel target = $region64
            $region63: #{tpu_custom_call.1} parent=55 // pred_region
              %s425 = sshrl.u32 %s412, 1
              // While loop
              $region65: #{tpu_custom_call.1} parent=63 // loop_pre_header
                _
              $region66: #{tpu_custom_call.1} parent=63 // loop_header
                %s427 = sphi 0, %s429
                %p428 = scmp.ge.s32.totalorder %s427, %s425
                %s432 = sphi 0, %s441
                %s433 = sphi %s405, %s444
                %s434 = sphi %s416, %s445
              $region67: #{tpu_custom_call.1} parent=63 // loop_header_branch
                %431 = sbr.rel (%p428) target = $region71
              $region68: #{tpu_custom_call.1} parent=63 // loop_body
                %v435 = vld [vmem:[%s433] sm:$0xff]
                %436 = vst [vmem:[%s434] sm:$0xff] %v435
                %v437 = vld [vmem:[%s433 + $0x8] sm:$0xff]
                %438 = vst [vmem:[%s434 + $0x8] sm:$0xff] %v437
                %s439 = sadd.s32 1, %s432
                %p440 = scmp.ge.s32.totalorder %s439, %s425
                %s441 = scalar_select %p440, 0, %s439
                %s442 = smul.u32 %s441, 16
                %s443 = smul.u32 %s441, 16
                %s444 = scalar_lea.vmem %s405, %s442 [#allocation7]
                %s445 = scalar_lea.vmem %s416, %s443
              $region69: #{tpu_custom_call.1} parent=63 // loop_footer
                %s429 = sadd.s32 %s427, 1
              $region70: #{tpu_custom_call.1} parent=63 // loop_footer_branch
                %426 = sbr.rel target = $region66
              $region71: #{tpu_custom_call.1} parent=63 // loop_exit
                _
              %s446 = sshrl.u32 %s412, 1
              %s447 = sand.u32 %s412, 1
              %s448 = smul.u32 %s446, 2
              %s449 = smul.u32 8, %s448
              %s450 = scalar_lea.vmem %s405, %s449 [#allocation7]
              %s451 = smul.u32 8, %s448
              %s452 = scalar_lea.vmem %s416, %s451
              // While loop
              $region72: #{tpu_custom_call.1} parent=63 // loop_pre_header
                _
              $region73: #{tpu_custom_call.1} parent=63 // loop_header
                %s454 = sphi 0, %s456
                %p455 = scmp.ge.s32.totalorder %s454, %s447
                %s459 = sphi 0, %s466
                %s460 = sphi %s450, %s469
                %s461 = sphi %s452, %s470
              $region74: #{tpu_custom_call.1} parent=63 // loop_header_branch
                %458 = sbr.rel (%p455) target = $region78
              $region75: #{tpu_custom_call.1} parent=63 // loop_body
                %v462 = vld [vmem:[%s460] sm:$0xff]
                %463 = vst [vmem:[%s461] sm:$0xff] %v462
                %s464 = sadd.s32 1, %s459
                %p465 = scmp.ge.s32.totalorder %s464, %s447
                %s466 = scalar_select %p465, 0, %s464
                %s467 = smul.u32 %s466, 8
                %s468 = smul.u32 %s466, 8
                %s469 = scalar_lea.vmem %s450, %s467 [#allocation7]
                %s470 = scalar_lea.vmem %s452, %s468
              $region76: #{tpu_custom_call.1} parent=63 // loop_footer
                %s456 = sadd.s32 %s454, 1
              $region77: #{tpu_custom_call.1} parent=63 // loop_footer_branch
                %453 = sbr.rel target = $region73
              $region78: #{tpu_custom_call.1} parent=63 // loop_exit
                _
            $region64: #{tpu_custom_call.1} parent=55 // pred_fallthru
              _
          $region56: #{tpu_custom_call.1} parent=51 // pred_fallthru
            _
          %521 = vnop
        $region52: #{tpu_custom_call.1} parent=39 // pred_fallthru
          _
      $region40: #{tpu_custom_call.1} parent=5 // pred_fallthru
        _
      %p522 = scmp.le.s32.totalorder 2, %s17
      // Predicated region
      $region101: #{tpu_custom_call.1} parent=5 // pred_check
        %p523 = pneg %p522
      $region102: #{tpu_custom_call.1} parent=5 // pred_check_branch
        %525 = sbr.rel (%p523) target = $region104
      $region103: #{tpu_custom_call.1} parent=5 // pred_region
        %s526 = ssub.s32 %s17, 2
        // Predicated region
        $region105: #{tpu_custom_call.1} parent=103 // pred_check
          %p527 = pneg %p156
        $region106: #{tpu_custom_call.1} parent=103 // pred_check_branch
          %529 = sbr.rel (%p527) target = $region108
        $region107: #{tpu_custom_call.1} parent=103 // pred_region
          %s530 = sand.u32 %s141, 1
          %s531 = sand.u32 %s141, 1
          %s532 = smul.addr %s531, 16
          %s533 = scalar_lea.vmem [#allocation7], %s532
        $region108: #{tpu_custom_call.1} parent=103 // pred_fallthru
          _
      $region104: #{tpu_custom_call.1} parent=5 // pred_fallthru
        _
    $region6: #{tpu_custom_call.1} parent=1 // loop_footer
      %s21 = sadd.s32 1, %s17
    $region7: #{tpu_custom_call.1} parent=1 // loop_footer_branch
      %16 = sbr.rel target = $region3
    $region8: #{tpu_custom_call.1} parent=1 // loop_exit
      _
    %534 = vsyncpa [#allocation4], 1
    %s535 = scalar_lea.sflag [#allocation4], 1
    %536 = vsyncpa %s535, 1
    %537 = vsyncpa [#allocation6], 1

// kernel: tpu_custom_call.1
$region0: #{tpu_custom_call.1}
  #allocation0 [shape = 'u32[]', space=smem, size = 0x4, offset = 0x4, fixed_abs, tag = 'smem constant byte address 0x4 - core index']
  #allocation1 [shape = 'u32[144,128]{1,0:T(1,128)}', space=vmem, size = 0x12000, scoped, tag = 'internal scratch']
  #allocation2 [shape = 'f32[1,1]{1,0:T(1,128)S(1)}', space=vmem, size = 0x200, scoped, tag = 'scoped memory for tpu_custom_call.1']
  %s0 = inlined_call_operand.hbm [shape: f32[18,32], index: 0, kind: input, shape index: {}]
  %s1 = inlined_call_operand.hbm [shape: f32[32,32], index: 1, kind: input, shape index: {}]
  %s2 = inlined_call_operand.vmem [shape: f32[1,32], index: 2, kind: input, shape index: {}]
  %s3 = inlined_call_operand.vmem [shape: f32[1,32], index: 3, kind: input, shape index: {}]
  %s4 = inlined_call_operand.<no memory space> [shape: f32[1,1], index: 4, kind: input, shape index: {}]
  %s5 = inlined_call_operand.vmem [shape: f32[18,1], index: 5, kind: output, shape index: {}]
  %s6 = sld [smem:[#allocation0]]
  $region109: #{tpu_custom_call.1} parent=0
    _
  %s8 = ssub.s32 1, %s6
  %s9 = scalar_select 0, %s8, %s6
  %v10 = vstv %s4
  %11 = vst [vmem:[#allocation2] sm:$0x1] %v10
  $region1: #{tpu_custom_call.1} parent=0
    #allocation3 [shape = 'u8[16384]{0}', space=vmem, size = 0x4000, scoped, tag = 'input window, operand 0']
    #allocation4 [shape = 's32[2]{0}', space=sflag, size = 0x8, scoped, tag = 'scoped memory for tpu_custom_call.1']
    #allocation5 [shape = 'u8[16384]{0}', space=vmem, size = 0x4000, scoped, tag = 'input window, operand 1, single buffered']
    #allocation6 [shape = 's32[1]{0}', space=sflag, size = 0x4, scoped, tag = 'scoped memory for tpu_custom_call.1']
    #allocation7 [shape = 'u8[16384]{0}', space=vmem, size = 0x4000, scoped, tag = 'output window, operand 0']
    %12 = vsyncpa [#allocation4], 0
    %s13 = scalar_lea.sflag [#allocation4], 1
    %14 = vsyncpa %s13, 0
    %15 = vsyncpa [#allocation6], 0
    loop: start=0, step=1, limit=4
    $region2: #{tpu_custom_call.1} parent=1 // loop_pre_header
      _
    $region3: #{tpu_custom_call.1} parent=1 // loop_header
      %s17 = sphi 0, %s21
      %p18 = scmp.ge.s32.totalorder %s17, 4
      %s27 = sphi 0, %s29
      %s30 = sphi 0, %s27
      %s31 = sphi 0, %s30
      %s47 = sphi 0, %s31
      %s51 = sphi 0, %s51
      %s53 = sphi 0, %s51
      %s54 = sphi 0, %s53
      %s68 = sphi 0, %s54
      %s72 = sphi 0, %s72
      %s74 = sphi 0, %s72
      %s75 = sphi 0, %s74
      %s89 = sphi 0, %s75
      %s93 = sphi 0, %s93
      %s95 = sphi 0, %s93
      %s96 = sphi 0, %s95
      %s110 = sphi 0, %s96
      %s114 = sphi 0, %s114
      %s116 = sphi 0, %s114
      %s117 = sphi 0, %s116
      %s131 = sphi 0, %s117
      %s137 = sphi 0, %s139
      %s140 = sphi 0, %s137
      %s141 = sphi 0, %s140
      %s157 = sphi 0, %s141
    $region4: #{tpu_custom_call.1} parent=1 // loop_header_branch
      %20 = sbr.rel (%p18) target = $region8
    $region5: #{tpu_custom_call.1} parent=1 // loop_body
      %s22 = ssub.s32 %s17, 1
      %s23 = ssub.s32 %s17, 2
      %s24 = sadd.s32 %s17, 1
      %s25 = ssub.s32 %s17, %s24
      %p26 = scmp.eq.s32.totalorder %s25, 0
      %s28 = sadd.s32 %s27, 1
      %s29 = scalar_select %p26, %s27, %s28
      %p32 = pneg %p26
      %p33 = scmp.eq.s32.totalorder %s17, 1
      %p34 = por %p32, %p33
      %p35 = scmp.ne.s32.totalorder %s27, %s30
      %p36 = scmp.eq.s32.totalorder %s17, 0
      %p37 = por %p35, %p36
      %p38 = scmp.ne.s32.totalorder %s27, %s30
      %p39 = scmp.eq.s32.totalorder %s22, 1
      %p40 = por %p38, %p39
      %p41 = scmp.ne.s32.totalorder %s30, %s31
      %p42 = scmp.eq.s32.totalorder %s22, 0
      %p43 = por %p41, %p42
      %p44 = scmp.ne.s32.totalorder %s30, %s31
      %p45 = scmp.eq.s32.totalorder %s23, 1
      %p46 = por %p44, %p45
      %p48 = scmp.ne.s32.totalorder %s31, %s47
      %p49 = scmp.eq.s32.totalorder %s23, 0
      %p50 = por %p48, %p49
      %s52 = sadd.s32 %s51, 1
      %p55 = scmp.eq.s32.totalorder %s17, 1
      %p56 = scmp.ne.s32.totalorder %s51, %s53
      %p57 = scmp.eq.s32.totalorder %s17, 0
      %p58 = por %p56, %p57
      %p59 = scmp.ne.s32.totalorder %s51, %s53
      %p60 = scmp.eq.s32.totalorder %s22, 1
      %p61 = por %p59, %p60
      %p62 = scmp.ne.s32.totalorder %s53, %s54
      %p63 = scmp.eq.s32.totalorder %s22, 0
      %p64 = por %p62, %p63
      %p65 = scmp.ne.s32.totalorder %s53, %s54
      %p66 = scmp.eq.s32.totalorder %s23, 1
      %p67 = por %p65, %p66
      %p69 = scmp.ne.s32.totalorder %s54, %s68
      %p70 = scmp.eq.s32.totalorder %s23, 0
      %p71 = por %p69, %p70
      %s73 = sadd.s32 %s72, 1
      %p76 = scmp.eq.s32.totalorder %s17, 1
      %p77 = scmp.ne.s32.totalorder %s72, %s74
      %p78 = scmp.eq.s32.totalorder %s17, 0
      %p79 = por %p77, %p78
      %p80 = scmp.ne.s32.totalorder %s72, %s74
      %p81 = scmp.eq.s32.totalorder %s22, 1
      %p82 = por %p80, %p81
      %p83 = scmp.ne.s32.totalorder %s74, %s75
      %p84 = scmp.eq.s32.totalorder %s22, 0
      %p85 = por %p83, %p84
      %p86 = scmp.ne.s32.totalorder %s74, %s75
      %p87 = scmp.eq.s32.totalorder %s23, 1
      %p88 = por %p86, %p87
      %p90 = scmp.ne.s32.totalorder %s75, %s89
      %p91 = scmp.eq.s32.totalorder %s23, 0
      %p92 = por %p90, %p91
      %s94 = sadd.s32 %s93, 1
      %p97 = scmp.eq.s32.totalorder %s17, 1
      %p98 = scmp.ne.s32.totalorder %s93, %s95
      %p99 = scmp.eq.s32.totalorder %s17, 0
      %p100 = por %p98, %p99
      %p101 = scmp.ne.s32.totalorder %s93, %s95
      %p102 = scmp.eq.s32.totalorder %s22, 1
      %p103 = por %p101, %p102
      %p104 = scmp.ne.s32.totalorder %s95, %s96
      %p105 = scmp.eq.s32.totalorder %s22, 0
      %p106 = por %p104, %p105
      %p107 = scmp.ne.s32.totalorder %s95, %s96
      %p108 = scmp.eq.s32.totalorder %s23, 1
      %p109 = por %p107, %p108
      %p111 = scmp.ne.s32.totalorder %s96, %s110
      %p112 = scmp.eq.s32.totalorder %s23, 0
      %p113 = por %p111, %p112
      %s115 = sadd.s32 %s114, 1
      %p118 = scmp.eq.s32.totalorder %s17, 1
      %p119 = scmp.ne.s32.totalorder %s114, %s116
      %p120 = scmp.eq.s32.totalorder %s17, 0
      %p121 = por %p119, %p120
      %p122 = scmp.ne.s32.totalorder %s114, %s116
      %p123 = scmp.eq.s32.totalorder %s22, 1
      %p124 = por %p122, %p123
      %p125 = scmp.ne.s32.totalorder %s116, %s117
      %p126 = scmp.eq.s32.totalorder %s22, 0
      %p127 = por %p125, %p126
      %p128 = scmp.ne.s32.totalorder %s116, %s117
      %p129 = scmp.eq.s32.totalorder %s23, 1
      %p130 = por %p128, %p129
      %p132 = scmp.ne.s32.totalorder %s117, %s131
      %p133 = scmp.eq.s32.totalorder %s23, 0
      %p134 = por %p132, %p133
      %s135 = ssub.s32 %s17, %s24
      %p136 = scmp.eq.s32.totalorder %s135, 0
      %s138 = sadd.s32 %s137, 1
      %s139 = scalar_select %p136, %s137, %s138
      %p142 = pneg %p136
      %p143 = scmp.eq.s32.totalorder %s17, 1
      %p144 = por %p142, %p143
      %p145 = scmp.ne.s32.totalorder %s137, %s140
      %p146 = scmp.eq.s32.totalorder %s17, 0
      %p147 = por %p145, %p146
      %p148 = scmp.ne.s32.totalorder %s137, %s140
      %p149 = scmp.eq.s32.totalorder %s22, 1
      %p150 = por %p148, %p149
      %p151 = scmp.ne.s32.totalorder %s140, %s141
      %p152 = scmp.eq.s32.totalorder %s22, 0
      %p153 = por %p151, %p152
      %p154 = scmp.ne.s32.totalorder %s140, %s141
      %p155 = scmp.eq.s32.totalorder %s23, 1
      %p156 = por %p154, %p155
      %p158 = scmp.ne.s32.totalorder %s141, %s157
      %p159 = scmp.eq.s32.totalorder %s23, 0
      %p160 = por %p158, %p159
      %p161 = scmp.le.s32.totalorder 1, %s17
      %p162 = scmp.lt.s32.totalorder %s17, 3
      %p163 = pnand %p161, %p162
      %p164 = pneg %p163
      // Predicated region
      $region9: #{tpu_custom_call.1} parent=5 // pred_check
        _
      $region10: #{tpu_custom_call.1} parent=5 // pred_check_branch
        %166 = sbr.rel (%p163) target = $region12
      $region11: #{tpu_custom_call.1} parent=5 // pred_region
        %s167 = ssub.s32 %s17, 1
        // Predicated region
        $region13: #{tpu_custom_call.1} parent=11 // pred_check
          %p168 = pneg %p64
        $region14: #{tpu_custom_call.1} parent=11 // pred_check_branch
          %170 = sbr.rel (%p168) target = $region16
        $region15: #{tpu_custom_call.1} parent=11 // pred_region
          %s172 = ssub.s32 512, 512
          %173 = vsyncadd [#allocation6], %s172
          %s174 = sshll.u32 [#allocation5], 4
          %s175 = int_to_ptr.vmem [resolvable:$true] %s174
          %180 = dma.hbm_to_vmem [thread:$0]  %s1, 512, %s175, [#allocation6], 128, 128, 8
        $region16: #{tpu_custom_call.1} parent=11 // pred_fallthru
          _
        // Predicated region
        $region17: #{tpu_custom_call.1} parent=11 // pred_check
          %p181 = pneg %p85
        $region18: #{tpu_custom_call.1} parent=11 // pred_check_branch
          %183 = sbr.rel (%p181) target = $region20
        $region19: #{tpu_custom_call.1} parent=11 // pred_region
          _
        $region20: #{tpu_custom_call.1} parent=11 // pred_fallthru
          _
        // Predicated region
        $region21: #{tpu_custom_call.1} parent=11 // pred_check
          %p184 = pneg %p106
        $region22: #{tpu_custom_call.1} parent=11 // pred_check_branch
          %186 = sbr.rel (%p184) target = $region24
        $region23: #{tpu_custom_call.1} parent=11 // pred_region
          _
        $region24: #{tpu_custom_call.1} parent=11 // pred_fallthru
          _
        // Predicated region
        $region25: #{tpu_custom_call.1} parent=11 // pred_check
          %p187 = pneg %p127
        $region26: #{tpu_custom_call.1} parent=11 // pred_check_branch
          %189 = sbr.rel (%p187) target = $region28
        $region27: #{tpu_custom_call.1} parent=11 // pred_region
          _
        $region28: #{tpu_custom_call.1} parent=11 // pred_fallthru
          _
      $region12: #{tpu_custom_call.1} parent=5 // pred_fallthru
        _
      %p190 = scmp.lt.s32.totalorder %s17, 2
      // Predicated region
      $region29: #{tpu_custom_call.1} parent=5 // pred_check
        %p191 = pneg %p190
      $region30: #{tpu_custom_call.1} parent=5 // pred_check_branch
        %193 = sbr.rel (%p191) target = $region32
      $region31: #{tpu_custom_call.1} parent=5 // pred_region
        // Predicated region
        $region33: #{tpu_custom_call.1} parent=31 // pred_check
          %p194 = pneg %p37
        $region34: #{tpu_custom_call.1} parent=31 // pred_check_branch
          %196 = sbr.rel (%p194) target = $region36
        $region35: #{tpu_custom_call.1} parent=31 // pred_region
          %s197 = sand.u32 %s27, 1
          %s198 = scalar_lea.sflag [#allocation4], %s197
          %s199 = sand.u32 %s27, 1
          %s200 = smul.addr %s199, 16
          %s201 = scalar_lea.vmem [#allocation3], %s200
          %s202 = smul.u32 2, %s17
          %s203 = ssub.s32 3, %s202
          %p204 = scmp.lt.s32.totalorder %s203, 2
          %s205 = scalar_select %p204, %s203, 2
          %s206 = smul.u32 128, %s205
          %s208 = ssub.s32 256, %s206
          %209 = vsyncadd %s198, %s208
          %p210 = scmp.ne.s32.totalorder 0, %s206
          %s211 = smul.addr %s202, 128
          %s212 = scalar_lea.hbm %s0, %s211
          %s213 = smul.u32 8, %s205
          %s214 = sshll.u32 %s201, 4
          %s215 = int_to_ptr.vmem [resolvable:$true] %s214
          %s216 = sshll.u32 %s213, 4
          %220 = dma.hbm_to_vmem [thread:$0]  (%p210), %s212, %s216, %s215, %s198, 128, 128, 8
        $region36: #{tpu_custom_call.1} parent=31 // pred_fallthru
          _
      $region32: #{tpu_custom_call.1} parent=5 // pred_fallthru
        _
      %p221 = scmp.le.s32.totalorder 1, %s17
      %p222 = scmp.lt.s32.totalorder %s17, 3
      %p223 = pnand %p221, %p222
      %p224 = pneg %p223
      // Predicated region
      $region37: #{tpu_custom_call.1} parent=5 // pred_check
        _
      $region38: #{tpu_custom_call.1} parent=5 // pred_check_branch
        %226 = sbr.rel (%p223) target = $region40
      $region39: #{tpu_custom_call.1} parent=5 // pred_region
        %s227 = ssub.s32 %s17, 1
        %s228 = sand.u32 %s30, 1
        %s229 = scalar_lea.sflag [#allocation4], %s228
        %s230 = sand.u32 %s30, 1
        %s231 = smul.addr %s230, 16
        %s232 = scalar_lea.vmem [#allocation3], %s231
        // Predicated region
        $region41: #{tpu_custom_call.1} parent=39 // pred_check
          %p233 = pneg %p43
        $region42: #{tpu_custom_call.1} parent=39 // pred_check_branch
          %235 = sbr.rel (%p233) target = $region44
        $region43: #{tpu_custom_call.1} parent=39 // pred_region
          %236 = dma.done %s229, 256
        $region44: #{tpu_custom_call.1} parent=39 // pred_fallthru
          _
        // Predicated region
        $region45: #{tpu_custom_call.1} parent=39 // pred_check
          %p237 = pneg %p64
        $region46: #{tpu_custom_call.1} parent=39 // pred_check_branch
          %239 = sbr.rel (%p237) target = $region48
        $region47: #{tpu_custom_call.1} parent=39 // pred_region
          %240 = dma.done [#allocation6], 512
        $region48: #{tpu_custom_call.1} parent=39 // pred_fallthru
          _
        %s241 = sand.u32 %s30, 1
        %s242 = scalar_lea.sflag [#allocation4], %s241
        %s243 = sand.u32 %s30, 1
        %s244 = smul.addr %s243, 16
        %s245 = scalar_lea.vmem [#allocation3], %s244
        %p246 = pneg %p43
        %p247 = pneg %p40
        %p248 = pneg %p64
        %p249 = pneg %p61
        %p250 = pneg %p85
        %p251 = pneg %p82
        %p252 = pneg %p106
        %p253 = pneg %p103
        %p254 = pneg %p127
        %p255 = pneg %p124
        %p256 = pneg %p153
        %p257 = pneg %p150
        %s258 = sand.u32 %s140, 1
        %s259 = sand.u32 %s140, 1
        %s260 = smul.addr %s259, 16
        %s261 = scalar_lea.vmem [#allocation7], %s260
        %s262 = smul.u32 2, %s22
        %s263 = ssub.s32 3, %s262
        %p264 = scmp.lt.s32.totalorder %s263, 2
        %s265 = scalar_select %p264, %s263, 2
        %s266 = smul.u32 128, %s265
        %s267 = smul.u32 2, %s22
        %s268 = ssub.s32 3, %s267
        %p269 = scmp.lt.s32.totalorder %s268, 2
        %s270 = scalar_select %p269, %s268, 2
        %s271 = smul.u32 128, %s270
        %v272 = vld [vmem:[%s232] sm:$0xff]
        %v273 = vld [vmem:[%s232 + $0x8] sm:$0xff]
        %v274 = vld [vmem:[#allocation5] sm:$0xff]
        %v275 = vld [vmem:[#allocation5 + $0x8] sm:$0xff]
        %v276 = vld [vmem:[#allocation5 + $0x10] sm:$0xff]
        %v277 = vld [vmem:[#allocation5 + $0x18] sm:$0xff]
        %v278 = vld [vmem:[%s2] sm:$0x1]
        %v280 = vlaneseq
        %v281 = vshrl.u32 %v280, 7
        %v282 = vsub.s32 0, %v281
        %v283 = vrot.slane %v278, %v282
        %vm285 = vcmask 261120
        %v287 = vsel %vm285, %v272, 0
        %v290 = vsel %vm285, %v273, 0
        %292 = vmatprep.subr.mxu0 0.0
        %293 = vmatpush1.msra.mxu0 %v274
        %294 = vmatprep.subr.mxu0 0.0
        %295 = vmatpush1.msra.mxu0 %v275
        %296 = vmatprep.subr.mxu0 0.0
        %297 = vmatpush1.msra.mxu0 %v276
        %298 = vmatprep.subr.mxu0 0.0
        %299 = vmatpush1.msra.mxu0 %v277
        %300 = vmatprep.subr.mxu0 0.0
        %301 = vmatpush1.msra.mxu0 0.0
        %302 = vmatprep.subr.mxu0 0.0
        %303 = vmatpush1.msra.mxu0 0.0
        %304 = vmatprep.subr.mxu0 0.0
        %305 = vmatpush1.msra.mxu0 0.0
        %306 = vmatprep.subr.mxu0 0.0
        %307 = vmatpush1.msra.mxu0 0.0
        %308 = vmatprep.subr.mxu0 0.0
        %309 = vmatpush1.msra.mxu0 0.0
        %310 = vmatprep.subr.mxu0 0.0
        %311 = vmatpush1.msra.mxu0 0.0
        %312 = vmatprep.subr.mxu0 0.0
        %313 = vmatpush1.msra.mxu0 0.0
        %314 = vmatprep.subr.mxu0 0.0
        %315 = vmatpush1.msra.mxu0 0.0
        %316 = vmatprep.subr.mxu0 0.0
        %317 = vmatpush1.msra.mxu0 0.0
        %318 = vmatprep.subr.mxu0 0.0
        %319 = vmatpush1.msra.mxu0 0.0
        %320 = vmatprep.subr.mxu0 0.0
        %321 = vmatpush1.msra.mxu0 0.0
        %322 = vmatprep.subr.mxu0 0.0
        %323 = vmatpush1.msra.mxu0 0.0
        %324 = vmatprep.subr.mxu0 0.0
        %325 = vmatpush1.msra.mxu0 0.0
        %326 = vmatprep.subr.mxu0 0.0
        %327 = vmatpush1.msra.mxu0 0.0
        %328 = vmatprep.subr.mxu0 0.0
        %329 = vmatpush1.msra.mxu0 0.0
        %330 = vmatprep.subr.mxu0 0.0
        %331 = vmatpush1.msra.mxu0 0.0
        %332 = vmatprep.subr.mxu0 0.0
        %333 = vmatpush1.msra.mxu0 0.0
        %334 = vmatprep.subr.mxu0 0.0
        %335 = vmatpush1.msra.mxu0 0.0
        %336 = vmatprep.subr.mxu0 0.0
        %337 = vmatpush1.msra.mxu0 0.0
        %338 = vmatprep.subr.mxu0 0.0
        %339 = vmatpush1.msra.mxu0 0.0
        %340 = vmatprep.subr.mxu0 0.0
        %341 = vmatpush1.msra.mxu0 0.0
        %342 = vmatprep.subr.mxu0 0.0
        %343 = vmatpush1.msra.mxu0 0.0
        %344 = vmatprep.subr.mxu0 0.0
        %345 = vmatpush1.msra.mxu0 0.0
        %346 = vmatprep.subr.mxu0 0.0
        %347 = vmatpush1.msra.mxu0 0.0
        %348 = vmatprep.subr.mxu0 0.0
        %349 = vmatpush1.msra.mxu0 0.0
        %350 = vmatprep.subr.mxu0 0.0
        %351 = vmatpush1.msra.mxu0 0.0
        %352 = vmatprep.subr.mxu0 0.0
        %353 = vmatpush1.msra.mxu0 0.0
        %354 = vmatprep.subr.mxu0 0.0
        %355 = vmatpush1.msra.mxu0 0.0
        %356 = vmatprep.mubr.f32.mxu0 0.0
        %357 = vmatmul.mubr.f32.gmra.mrb[0].mxu0 %v287
        %v358 = vpop.f32.mrb[0].mxu0
        %v359 = vadd.f32 %v283, %v358
        %v360 = vpop.f32.mrb[0].mxu0
        %361 = vmatprep.mubr.f32.mxu0 0.0
        %362 = vmatmul.mubr.f32.gmra.mrb[0].mxu0 %v290
        %v363 = vpop.f32.mrb[0].mxu0
        %v364 = vadd.f32 %v283, %v363
        %v365 = vpop.f32.mrb[0].mxu0
        %366 = vdwg.mxu0
        %v367 = vmax.f32 %v359, 0.0
        %v368 = vmax.f32 %v364, 0.0
        %v369 = vld [vmem:[%s3] sm:$0x1]
        %v371 = vlaneseq
        %v372 = vshrl.u32 %v371, 7
        %v373 = vsub.s32 0, %v372
        %v374 = vrot.slane %v369, %v373
        %v376 = vmul.f32 %v367, %v374
        %v377 = vmul.f32 %v368, %v374
        %v378 = vsel %vm285, %v376, 0.0
        %379 = vadd.xlane.f32.xlu0 %v378
        %v380 = vpop.xlane.xlu0 %379
        %v381 = vsel %vm285, %v377, 0.0
        %382 = vadd.xlane.f32.xlu0 %v381
        %v383 = vpop.xlane.xlu0 %382
        %v384 = vld [vmem:[#allocation2] sm:$0x1]
        %v386 = vlaneseq
        %v387 = vshrl.u32 %v386, 7
        %v388 = vsub.s32 0, %v387
        %v389 = vrot.slane %v384, %v388
        %v391 = vadd.f32 %v380, %v389
        %v392 = vadd.f32 %v383, %v389
        %v393 = vtanh.pop %v391
        %v394 = vtanh.pop %v392
        %v395 = vmul.f32 %v393, 2.0
        %v396 = vmul.f32 %v394, 2.0
        %v397 = vadd.f32 %v395, 3.0
        %v398 = vadd.f32 %v396, 3.0
        %vm399 = vcmask 7168
        %400 = vst.msk [vmem:[%s261] sm:$0xff] %vm399, %v397
        %401 = vst.msk [vmem:[%s261 + $0x8] sm:$0xff] %vm399, %v398
        %s402 = sand.u32 %s140, 1
        %s403 = sand.u32 %s140, 1
        %s404 = smul.addr %s403, 16
        %s405 = scalar_lea.vmem [#allocation7], %s404
        // Predicated region
        $region49: #{tpu_custom_call.1} parent=39 // pred_check
          %p406 = pneg %p150
        $region50: #{tpu_custom_call.1} parent=39 // pred_check_branch
          %408 = sbr.rel (%p406) target = $region52
        $region51: #{tpu_custom_call.1} parent=39 // pred_region
          %s409 = smul.u32 2, %s22
          %s410 = ssub.s32 3, %s409
          %p411 = scmp.lt.s32.totalorder %s410, 2
          %s412 = scalar_select %p411, %s410, 2
          %s413 = smul.u32 128, %s412
          %p414 = scmp.ne.s32.totalorder 0, %s413
          %s415 = smul.addr %s409, 8
          %s416 = scalar_lea.vmem %s5, %s415
          // Predicated region
          $region53: #{tpu_custom_call.1} parent=51 // pred_check
            %p417 = pneg %p414
          $region54: #{tpu_custom_call.1} parent=51 // pred_check_branch
            %419 = sbr.rel (%p417) target = $region56
          $region55: #{tpu_custom_call.1} parent=51 // pred_region
            // Predicated region
            $region57: #{tpu_custom_call.1} parent=55 // pred_check
              _
            $region58: #{tpu_custom_call.1} parent=55 // pred_check_branch
              %421 = sbr.rel (0) target = $region60
            $region59: #{tpu_custom_call.1} parent=55 // pred_region
              // Predicated region
              $region79: #{tpu_custom_call.1} parent=59 // pred_check
                _
              $region80: #{tpu_custom_call.1} parent=59 // pred_check_branch
                %472 = sbr.rel (0) target = $region82
              $region81: #{tpu_custom_call.1} parent=59 // pred_region
                %s473 = sshrl.u32 %s412, 1
                // While loop
                $region83: #{tpu_custom_call.1} parent=81 // loop_pre_header
                  _
                $region84: #{tpu_custom_call.1} parent=81 // loop_header
                  %s475 = sphi 0, %s477
                  %p476 = scmp.ge.s32.totalorder %s475, %s473
                  %s480 = sphi 0, %s489
                  %s481 = sphi %s405, %s492
                  %s482 = sphi %s416, %s493
                $region85: #{tpu_custom_call.1} parent=81 // loop_header_branch
                  %479 = sbr.rel (%p476) target = $region89
                $region86: #{tpu_custom_call.1} parent=81 // loop_body
                  %v483 = vld [vmem:[%s481] sm:$0xff]
                  %484 = vst [vmem:[%s482] sm:$0xff] %v483
                  %v485 = vld [vmem:[%s481 + $0x8] sm:$0xff]
                  %486 = vst [vmem:[%s482 + $0x8] sm:$0xff] %v485
                  %s487 = sadd.s32 1, %s480
                  %p488 = scmp.ge.s32.totalorder %s487, %s473
                  %s489 = scalar_select %p488, 0, %s487
                  %s490 = smul.u32 %s489, 16
                  %s491 = smul.u32 %s489, 16
                  %s492 = scalar_lea.vmem %s405, %s490 [#allocation7]
                  %s493 = scalar_lea.vmem %s416, %s491
                $region87: #{tpu_custom_call.1} parent=81 // loop_footer
                  %s477 = sadd.s32 %s475, 1
                $region88: #{tpu_custom_call.1} parent=81 // loop_footer_branch
                  %474 = sbr.rel target = $region84
                $region89: #{tpu_custom_call.1} parent=81 // loop_exit
                  _
                %s494 = sshrl.u32 %s412, 1
                %s495 = sand.u32 %s412, 1
                %s496 = smul.u32 %s494, 2
                %s497 = smul.u32 8, %s496
                %s498 = scalar_lea.vmem %s405, %s497 [#allocation7]
                %s499 = smul.u32 8, %s496
                %s500 = scalar_lea.vmem %s416, %s499
                // While loop
                $region90: #{tpu_custom_call.1} parent=81 // loop_pre_header
                  _
                $region91: #{tpu_custom_call.1} parent=81 // loop_header
                  %s502 = sphi 0, %s504
                  %p503 = scmp.ge.s32.totalorder %s502, %s495
                  %s507 = sphi 0, %s514
                  %s508 = sphi %s498, %s517
                  %s509 = sphi %s500, %s518
                $region92: #{tpu_custom_call.1} parent=81 // loop_header_branch
                  %506 = sbr.rel (%p503) target = $region96
                $region93: #{tpu_custom_call.1} parent=81 // loop_body
                  %v510 = vld [vmem:[%s508] sm:$0xff]
                  %511 = vst [vmem:[%s509] sm:$0xff] %v510
                  %s512 = sadd.s32 1, %s507
                  %p513 = scmp.ge.s32.totalorder %s512, %s495
                  %s514 = scalar_select %p513, 0, %s512
                  %s515 = smul.u32 %s514, 8
                  %s516 = smul.u32 %s514, 8
                  %s517 = scalar_lea.vmem %s498, %s515 [#allocation7]
                  %s518 = scalar_lea.vmem %s500, %s516
                $region94: #{tpu_custom_call.1} parent=81 // loop_footer
                  %s504 = sadd.s32 %s502, 1
                $region95: #{tpu_custom_call.1} parent=81 // loop_footer_branch
                  %501 = sbr.rel target = $region91
                $region96: #{tpu_custom_call.1} parent=81 // loop_exit
                  _
              $region82: #{tpu_custom_call.1} parent=59 // pred_fallthru
                _
              // Predicated region
              $region97: #{tpu_custom_call.1} parent=59 // pred_check
                _
              $region98: #{tpu_custom_call.1} parent=59 // pred_check_branch
                %520 = sbr.rel target = $region100
              $region99: #{tpu_custom_call.1} parent=59 // pred_region
                _
              $region100: #{tpu_custom_call.1} parent=59 // pred_fallthru
                _
            $region60: #{tpu_custom_call.1} parent=55 // pred_fallthru
              _
            // Predicated region
            $region61: #{tpu_custom_call.1} parent=55 // pred_check
              _
            $region62: #{tpu_custom_call.1} parent=55 // pred_check_branch
              %423 = sbr.rel target = $region64
            $region63: #{tpu_custom_call.1} parent=55 // pred_region
              %s425 = sshrl.u32 %s412, 1
              // While loop
              $region65: #{tpu_custom_call.1} parent=63 // loop_pre_header
                _
              $region66: #{tpu_custom_call.1} parent=63 // loop_header
                %s427 = sphi 0, %s429
                %p428 = scmp.ge.s32.totalorder %s427, %s425
                %s432 = sphi 0, %s441
                %s433 = sphi %s405, %s444
                %s434 = sphi %s416, %s445
              $region67: #{tpu_custom_call.1} parent=63 // loop_header_branch
                %431 = sbr.rel (%p428) target = $region71
              $region68: #{tpu_custom_call.1} parent=63 // loop_body
                %v435 = vld [vmem:[%s433] sm:$0xff]
                %436 = vst [vmem:[%s434] sm:$0xff] %v435
                %v437 = vld [vmem:[%s433 + $0x8] sm:$0xff]
                %438 = vst [vmem:[%s434 + $0x8] sm:$0xff] %v437
                %s439 = sadd.s32 1, %s432
                %p440 = scmp.ge.s32.totalorder %s439, %s425
                %s441 = scalar_select %p440, 0, %s439
                %s442 = smul.u32 %s441, 16
                %s443 = smul.u32 %s441, 16
                %s444 = scalar_lea.vmem %s405, %s442 [#allocation7]
                %s445 = scalar_lea.vmem %s416, %s443
              $region69: #{tpu_custom_call.1} parent=63 // loop_footer
                %s429 = sadd.s32 %s427, 1
              $region70: #{tpu_custom_call.1} parent=63 // loop_footer_branch
                %426 = sbr.rel target = $region66
              $region71: #{tpu_custom_call.1} parent=63 // loop_exit
                _
              %s446 = sshrl.u32 %s412, 1
              %s447 = sand.u32 %s412, 1
              %s448 = smul.u32 %s446, 2
              %s449 = smul.u32 8, %s448
              %s450 = scalar_lea.vmem %s405, %s449 [#allocation7]
              %s451 = smul.u32 8, %s448
              %s452 = scalar_lea.vmem %s416, %s451
              // While loop
              $region72: #{tpu_custom_call.1} parent=63 // loop_pre_header
                _
              $region73: #{tpu_custom_call.1} parent=63 // loop_header
                %s454 = sphi 0, %s456
                %p455 = scmp.ge.s32.totalorder %s454, %s447
                %s459 = sphi 0, %s466
                %s460 = sphi %s450, %s469
                %s461 = sphi %s452, %s470
              $region74: #{tpu_custom_call.1} parent=63 // loop_header_branch
                %458 = sbr.rel (%p455) target = $region78
              $region75: #{tpu_custom_call.1} parent=63 // loop_body
                %v462 = vld [vmem:[%s460] sm:$0xff]
                %463 = vst [vmem:[%s461] sm:$0xff] %v462
                %s464 = sadd.s32 1, %s459
                %p465 = scmp.ge.s32.totalorder %s464, %s447
                %s466 = scalar_select %p465, 0, %s464
                %s467 = smul.u32 %s466, 8
                %s468 = smul.u32 %s466, 8
                %s469 = scalar_lea.vmem %s450, %s467 [#allocation7]
                %s470 = scalar_lea.vmem %s452, %s468
              $region76: #{tpu_custom_call.1} parent=63 // loop_footer
                %s456 = sadd.s32 %s454, 1
              $region77: #{tpu_custom_call.1} parent=63 // loop_footer_branch
                %453 = sbr.rel target = $region73
              $region78: #{tpu_custom_call.1} parent=63 // loop_exit
                _
            $region64: #{tpu_custom_call.1} parent=55 // pred_fallthru
              _
          $region56: #{tpu_custom_call.1} parent=51 // pred_fallthru
            _
          %521 = vnop
        $region52: #{tpu_custom_call.1} parent=39 // pred_fallthru
          _
      $region40: #{tpu_custom_call.1} parent=5 // pred_fallthru
        _
      %p522 = scmp.le.s32.totalorder 2, %s17
      // Predicated region
      $region101: #{tpu_custom_call.1} parent=5 // pred_check
        %p523 = pneg %p522
      $region102: #{tpu_custom_call.1} parent=5 // pred_check_branch
        %525 = sbr.rel (%p523) target = $region104
      $region103: #{tpu_custom_call.1} parent=5 // pred_region
        %s526 = ssub.s32 %s17, 2
        // Predicated region
        $region105: #{tpu_custom_call.1} parent=103 // pred_check
          %p527 = pneg %p156
        $region106: #{tpu_custom_call.1} parent=103 // pred_check_branch
          %529 = sbr.rel (%p527) target = $region108
        $region107: #{tpu_custom_call.1} parent=103 // pred_region
          %s530 = sand.u32 %s141, 1
          %s531 = sand.u32 %s141, 1
          %s532 = smul.addr %s531, 16
          %s533 = scalar_lea.vmem [#allocation7], %s532
        $region108: #{tpu_custom_call.1} parent=103 // pred_fallthru
          _
      $region104: #{tpu_custom_call.1} parent=5 // pred_fallthru
        _
    $region6: #{tpu_custom_call.1} parent=1 // loop_footer
      %s21 = sadd.s32 1, %s17
    $region7: #{tpu_custom_call.1} parent=1 // loop_footer_branch
      %16 = sbr.rel target = $region3
    $region8: #{tpu_custom_call.1} parent=1 // loop_exit
      _
    %534 = vsyncpa [#allocation4], 1
    %s535 = scalar_lea.sflag [#allocation4], 1
    %536 = vsyncpa %s535, 1
    %537 = vsyncpa [#allocation6], 1

</llo_original>
